<compile_context>
chip_gen: v7x
topology: tpu7x:2x2x1
jax: 0.10.0
libtpu: 0.0.40
codegen_flags: <defaults>
</compile_context>

<pallas_src>
import math

import jax
import jax.numpy as jnp
from jax.experimental import pallas as pl
from jax.experimental.pallas import tpu as pltpu


def _res_kernel(x_ref, band1_ref, scale_ref, bias_ref, band2_ref, b2_ref,
                o_ref):
    """One block of B_blk batch elements per grid step.

    x_ref    : (B_blk, H, WC) bf16   input, channels-last flattened into lanes
    band1_ref: (WC, 3*WC)     bf16   fused banded conv1 weights (dy=0,1,2)
    scale_ref: (1, WC)        f32    folded BN scale, tiled across W
    bias_ref : (1, WC)        f32    folded BN bias (incl. conv1 bias), tiled
    band2_ref: (WC, 3*WC)     bf16   fused banded conv2 weights
    b2_ref   : (1, WC)        f32    conv2 bias, tiled across W
    o_ref    : (B_blk, H, WC) bf16   output
    """
    B, H, WC = x_ref.shape
    M = B * H
    x = x_ref[...].reshape(M, WC)  # bf16

    # Image-row index inside the stacked slab; masks the circular roll at
    # image (and batch) boundaries.
    row = jax.lax.broadcasted_iota(jnp.int32, (M, WC), 0) % H
    top = row == 0          # rows whose "h-1" neighbour does not exist
    bot = row == H - 1      # rows whose "h+1" neighbour does not exist

    def conv3x3(inp_bf16, band_ref):
        # Horizontal taps + channel mix live inside one fused banded matmul
        # (implicit zero padding along W is encoded in the band structure).
        z = jnp.dot(inp_bf16, band_ref[...],
                    preferred_element_type=jnp.float32)     # (M, 3*WC)
        z0 = z[:, 0:WC]            # dy = 0  -> needs z0[h-1]
        z1 = z[:, WC:2 * WC]       # dy = 1  -> z1[h]
        z2 = z[:, 2 * WC:3 * WC]   # dy = 2  -> needs z2[h+1]
        zd = jnp.where(top, 0.0, pltpu.roll(z0, shift=1, axis=0))
        zu = jnp.where(bot, 0.0, pltpu.roll(z2, shift=M - 1, axis=0))
        return z1 + zd + zu

    # conv1 + folded BN + ReLU
    y = conv3x3(x, band1_ref)
    y = jnp.maximum(y * scale_ref[...] + bias_ref[...], 0.0)

    # conv2 + bias
    y2 = conv3x3(y.astype(jnp.bfloat16), band2_ref) + b2_ref[...]

    # residual add + ReLU
    out = jnp.maximum(x.astype(jnp.float32) + y2, 0.0)
    o_ref[...] = out.reshape(B, H, WC).astype(o_ref.dtype)


def _pick_batch_block(n, h, target_m=256):
    """Largest divisor of n with B_blk*H <= target_m, keeping >=2 grid steps
    when the batch allows (v7x has 2 TensorCores)."""
    best = 1
    for d in range(1, n + 1):
        if n % d != 0:
            continue
        if d * h <= target_m and (n < 2 or n // d >= 2):
            best = max(best, d)
    return best


def prepare_res_params(w1, b1, gamma, beta, run_mean, run_var, w2, b2, width,
                       eps=1e-5):
    """Hoisted weight preprocessing — run ONCE at weight-load time.

    Folds the 3x3 convs into fused banded (WC, 3*WC) bf16 matrices (channels
    zero-padded so WC = width * Cp is a multiple of 128) and folds
    conv1-bias + BatchNorm(eval) into per-channel scale/bias.
    """
    C = w1.shape[0]
    m = 128 // math.gcd(width, 128)
    Cp = ((C + m - 1) // m) * m           # padded channel count
    WC = width * Cp
    pad = Cp - C

    def hwio_padded(w_oihw):
        w = jnp.transpose(w_oihw, (2, 3, 1, 0)).astype(jnp.float32)  # HWIO
        return jnp.pad(w, ((0, 0), (0, 0), (0, pad), (0, pad)))

    def make_band(w_hwio):
        bands = []
        for dy in range(3):
            acc = jnp.zeros((WC, WC), jnp.float32)
            for dx in range(3):
                # S[wi, wo] = 1  iff  wi == wo + dx - 1 (implicit zero pad)
                s = jnp.eye(width, width, k=1 - dx, dtype=jnp.float32)
                acc = acc + jnp.kron(s, w_hwio[dy, dx])
            bands.append(acc)
        return jnp.concatenate(bands, axis=1).astype(jnp.bfloat16)  # (WC,3WC)

    scale = gamma / jnp.sqrt(run_var + eps)               # (C,)
    bias = beta + (b1 - run_mean) * scale                 # (C,)
    pad1 = lambda v: jnp.pad(v.astype(jnp.float32), (0, pad))

    return {
        "band1": make_band(hwio_padded(w1)),
        "band2": make_band(hwio_padded(w2)),
        "scale": jnp.tile(pad1(scale), width).reshape(1, WC),
        "bias": jnp.tile(pad1(bias), width).reshape(1, WC),
        "b2": jnp.tile(pad1(b2), width).reshape(1, WC),
    }


def _res_pallas(x_bf, params):
    """Channels-last fast path: x_bf is (N, H, WC) bf16; returns (N, H, WC) bf16."""
    N, H, WC = x_bf.shape
    b_blk = _pick_batch_block(N, H)
    grid = (N // b_blk,)

    return pl.pallas_call(
        _res_kernel,
        out_shape=jax.ShapeDtypeStruct((N, H, WC), jnp.bfloat16),
        grid_spec=pltpu.PrefetchScalarGridSpec(
            num_scalar_prefetch=0,
            grid=grid,
            in_specs=[
                pl.BlockSpec((b_blk, H, WC), lambda n: (n, 0, 0)),
                pl.BlockSpec((WC, 3 * WC), lambda n: (0, 0)),
                pl.BlockSpec((1, WC), lambda n: (0, 0)),
                pl.BlockSpec((1, WC), lambda n: (0, 0)),
                pl.BlockSpec((WC, 3 * WC), lambda n: (0, 0)),
                pl.BlockSpec((1, WC), lambda n: (0, 0)),
            ],
            out_specs=pl.BlockSpec((b_blk, H, WC), lambda n: (n, 0, 0)),
        ),
        compiler_params=pltpu.CompilerParams(
            dimension_semantics=("parallel",)),
    )(x_bf, params["band1"], params["scale"], params["bias"],
      params["band2"], params["b2"])


@jax.jit
def res_forward_nchw(x_nchw, params):
    """PyTorch-convention entry point: x is NCHW (f32); returns NCHW f32."""
    N, C, H, W = x_nchw.shape
    WC = params["band1"].shape[0]
    Cp = WC // W

    # NCHW -> NHWC, zero-pad channels, flatten W into lanes, bf16 activations.
    x = jnp.transpose(x_nchw, (0, 2, 3, 1))
    x = jnp.pad(x, ((0, 0), (0, 0), (0, 0), (0, Cp - C)))
    x_bf = x.reshape(N, H, WC).astype(jnp.bfloat16)

    out = _res_pallas(x_bf, params)

    out_nhwc = out.reshape(N, H, W, Cp)[:, :, :, :C]
    return jnp.transpose(out_nhwc, (0, 3, 1, 2)).astype(jnp.float32)


def _ref_forward_nchw(x_nchw, w1, b1, gamma, beta, run_mean, run_var, w2, b2):
    """Pure-JAX reference (mirrors the PyTorch module in eval mode, with the
    same bf16 quantization of activations / weights as the kernel)."""
    eps = 1e-5
    f32 = jnp.float32
    bf = lambda a: a.astype(jnp.bfloat16).astype(f32)

    x = bf(jnp.transpose(x_nchw, (0, 2, 3, 1)))
    w1_hwio = bf(jnp.transpose(w1, (2, 3, 1, 0)))
    w2_hwio = bf(jnp.transpose(w2, (2, 3, 1, 0)))
    dn = ("NHWC", "HWIO", "NHWC")

    y = jax.lax.conv_general_dilated(x, w1_hwio, (1, 1), "SAME",
                                     dimension_numbers=dn,
                                     preferred_element_type=f32) + b1
    y = (y - run_mean) / jnp.sqrt(run_var + eps) * gamma + beta
    y = jnp.maximum(y, 0.0)
    y = bf(y)
    y = jax.lax.conv_general_dilated(y, w2_hwio, (1, 1), "SAME",
                                     dimension_numbers=dn,
                                     preferred_element_type=f32) + b2
    out = jnp.maximum(x + y, 0.0)
    return jnp.transpose(out, (0, 3, 1, 2))


if __name__ == "__main__":
    key = jax.random.PRNGKey(0)
    N, C, H, W = 2, 4, 16, 16  # small shapes consistent with Res(in_channel=4)

    keys = jax.random.split(key, 8)
    x = jax.random.normal(keys[0], (N, C, H, W), jnp.float32)

    # deterministic parameter init (shapes from nn.Conv2d / nn.BatchNorm2d)
    w1 = jax.random.normal(keys[1], (C, C, 3, 3), jnp.float32) * 0.1   # OIHW
    b1 = jax.random.normal(keys[2], (C,), jnp.float32) * 0.1
    gamma = 1.0 + 0.1 * jax.random.normal(keys[3], (C,), jnp.float32)
    beta = 0.1 * jax.random.normal(keys[4], (C,), jnp.float32)
    run_mean = 0.1 * jax.random.normal(keys[5], (C,), jnp.float32)
    run_var = jnp.abs(jax.random.normal(keys[6], (C,), jnp.float32)) + 0.5
    w2 = jax.random.normal(keys[7], (C, C, 3, 3), jnp.float32) * 0.1   # OIHW
    b2 = 0.05 * jnp.arange(C, dtype=jnp.float32)

    # Weight preprocessing hoisted out of the forward path (done once).
    params = prepare_res_params(w1, b1, gamma, beta, run_mean, run_var,
                                w2, b2, width=W)
    params = jax.tree_util.tree_map(jax.block_until_ready, params)

    out = res_forward_nchw(x, params)
    out = jax.block_until_ready(out)

    ref = _ref_forward_nchw(x, w1, b1, gamma, beta, run_mean, run_var, w2, b2)
    assert out.shape == (N, C, H, W)
    max_err = float(jnp.max(jnp.abs(out - ref)))
    assert jnp.allclose(out, ref, atol=2e-2, rtol=2e-2), max_err

    print("KERNEL_OK")
</pallas_src>

<mosaic_0001>
module attributes {stable_mosaic.version = 11 : i64} {
  func.func @_res_kernel(%arg0: i32, %arg1: memref<1x16x128xbf16, #tpu.memory_space<vmem>>, %arg2: memref<128x384xbf16, #tpu.memory_space<vmem>>, %arg3: memref<1x128xf32, #tpu.memory_space<vmem>>, %arg4: memref<1x128xf32, #tpu.memory_space<vmem>>, %arg5: memref<128x384xbf16, #tpu.memory_space<vmem>>, %arg6: memref<1x128xf32, #tpu.memory_space<vmem>>, %arg7: memref<1x16x128xbf16, #tpu.memory_space<vmem>>) attributes {dimension_semantics = [#tpu.dimension_semantics<parallel>], iteration_bounds = array<i64: 2>, scalar_prefetch = 0 : i64, scratch_operands = 0 : i64, tpu.core_type = #tpu.core_type<tc>, window_params = [{transform_indices = @transform_0, window_bounds = array<i64: 1, 16, 128>}, {pipeline_mode = #tpu.pipeline_mode<synchronous>, transform_indices = @transform_1, window_bounds = array<i64: 128, 384>}, {pipeline_mode = #tpu.pipeline_mode<synchronous>, transform_indices = @transform_2, window_bounds = array<i64: 1, 128>}, {pipeline_mode = #tpu.pipeline_mode<synchronous>, transform_indices = @transform_3, window_bounds = array<i64: 1, 128>}, {pipeline_mode = #tpu.pipeline_mode<synchronous>, transform_indices = @transform_4, window_bounds = array<i64: 128, 384>}, {pipeline_mode = #tpu.pipeline_mode<synchronous>, transform_indices = @transform_5, window_bounds = array<i64: 1, 128>}, {transform_indices = @transform_6, window_bounds = array<i64: 1, 16, 128>}]} {
    %c0 = arith.constant 0 : index
    %c0_0 = arith.constant 0 : index
    %c0_1 = arith.constant 0 : index
    %0 = vector.load %arg1[%c0, %c0_0, %c0_1] : memref<1x16x128xbf16, #tpu.memory_space<vmem>>, vector<1x16x128xbf16>
    %1 = vector.shape_cast %0 : vector<1x16x128xbf16> to vector<16x128xbf16>
    %2 = tpu.iota {dimensions = array<i32: 0>} : vector<16x128xi32>
    %c16_i32 = arith.constant 16 : i32
    %c0_i32 = arith.constant 0 : i32
    %3 = arith.cmpi eq, %c16_i32, %c0_i32 : i32
    %c1_i32 = arith.constant 1 : i32
    %4 = arith.select %3, %c1_i32, %c16_i32 : i32
    %5 = vector.broadcast %4 : i32 to vector<16x128xi32>
    %6 = arith.remsi %2, %5 : vector<16x128xi32>
    %c0_i32_2 = arith.constant 0 : i32
    %7 = vector.broadcast %c0_i32_2 : i32 to vector<16x128xi32>
    %8 = arith.cmpi ne, %6, %7 : vector<16x128xi32>
    %c0_i32_3 = arith.constant 0 : i32
    %9 = vector.broadcast %c0_i32_3 : i32 to vector<16x128xi32>
    %10 = arith.cmpi slt, %6, %9 : vector<16x128xi32>
    %c0_i32_4 = arith.constant 0 : i32
    %11 = arith.cmpi slt, %4, %c0_i32_4 : i32
    %12 = vector.broadcast %11 : i1 to vector<16x128xi1>
    %13 = vector.broadcast %12 : vector<16x128xi1> to vector<16x128xi1>
    %14 = arith.xori %10, %13 : vector<16x128xi1>
    %15 = arith.andi %14, %8 : vector<16x128xi1>
    %16 = vector.broadcast %4 : i32 to vector<16x128xi32>
    %17 = arith.addi %6, %16 : vector<16x128xi32>
    %18 = arith.select %15, %17, %6 : vector<16x128xi1>, vector<16x128xi32>
    %c0_i32_5 = arith.constant 0 : i32
    %19 = vector.broadcast %c0_i32_5 : i32 to vector<16x128xi32>
    %20 = arith.cmpi eq, %18, %19 : vector<16x128xi32>
    %c15_i32 = arith.constant 15 : i32
    %21 = vector.broadcast %c15_i32 : i32 to vector<16x128xi32>
    %22 = arith.cmpi eq, %18, %21 : vector<16x128xi32>
    %c0_6 = arith.constant 0 : index
    %c0_7 = arith.constant 0 : index
    %23 = vector.load %arg2[%c0_6, %c0_7] : memref<128x384xbf16, #tpu.memory_space<vmem>>, vector<128x384xbf16>
    %cst = arith.constant dense<0.000000e+00> : vector<16x384xf32>
    %24 = tpu.matmul %1, %23, %cst {dimension_numbers = #tpu.dot_dimension_numbers<[1], [0], [0], [1], [0, 0, 1, 1], [], []>} : vector<16x128xbf16>, vector<128x384xbf16>, vector<16x384xf32> -> vector<16x384xf32>
    %25 = vector.extract_strided_slice %24 {offsets = [0, 0], sizes = [16, 128], strides = [1, 1]} : vector<16x384xf32> to vector<16x128xf32>
    %26 = vector.extract_strided_slice %24 {offsets = [0, 128], sizes = [16, 128], strides = [1, 1]} : vector<16x384xf32> to vector<16x128xf32>
    %27 = vector.extract_strided_slice %24 {offsets = [0, 256], sizes = [16, 128], strides = [1, 1]} : vector<16x384xf32> to vector<16x128xf32>
    %c1_i32_8 = arith.constant 1 : i32
    %28 = tpu.dynamic_rotate %25 by %c1_i32_8 dim 0 : vector<16x128xf32>, i32 -> vector<16x128xf32>
    %cst_9 = arith.constant 0.000000e+00 : f32
    %29 = vector.broadcast %cst_9 : f32 to vector<16x128xf32>
    %30 = arith.select %20, %29, %28 : vector<16x128xi1>, vector<16x128xf32>
    %c15_i32_10 = arith.constant 15 : i32
    %31 = tpu.dynamic_rotate %27 by %c15_i32_10 dim 0 : vector<16x128xf32>, i32 -> vector<16x128xf32>
    %cst_11 = arith.constant 0.000000e+00 : f32
    %32 = vector.broadcast %cst_11 : f32 to vector<16x128xf32>
    %33 = arith.select %22, %32, %31 : vector<16x128xi1>, vector<16x128xf32>
    %34 = arith.addf %26, %30 : vector<16x128xf32>
    %35 = arith.addf %34, %33 : vector<16x128xf32>
    %c0_12 = arith.constant 0 : index
    %c0_13 = arith.constant 0 : index
    %36 = vector.load %arg3[%c0_12, %c0_13] : memref<1x128xf32, #tpu.memory_space<vmem>>, vector<1x128xf32>
    %37 = vector.broadcast %36 : vector<1x128xf32> to vector<16x128xf32>
    %38 = arith.mulf %35, %37 : vector<16x128xf32>
    %c0_14 = arith.constant 0 : index
    %c0_15 = arith.constant 0 : index
    %39 = vector.load %arg4[%c0_14, %c0_15] : memref<1x128xf32, #tpu.memory_space<vmem>>, vector<1x128xf32>
    %40 = vector.broadcast %39 : vector<1x128xf32> to vector<16x128xf32>
    %41 = arith.addf %38, %40 : vector<16x128xf32>
    %cst_16 = arith.constant 0.000000e+00 : f32
    %42 = vector.broadcast %cst_16 : f32 to vector<16x128xf32>
    %43 = arith.maximumf %41, %42 : vector<16x128xf32>
    %44 = arith.truncf %43 : vector<16x128xf32> to vector<16x128xbf16>
    %c0_17 = arith.constant 0 : index
    %c0_18 = arith.constant 0 : index
    %45 = vector.load %arg5[%c0_17, %c0_18] : memref<128x384xbf16, #tpu.memory_space<vmem>>, vector<128x384xbf16>
    %cst_19 = arith.constant dense<0.000000e+00> : vector<16x384xf32>
    %46 = tpu.matmul %44, %45, %cst_19 {dimension_numbers = #tpu.dot_dimension_numbers<[1], [0], [0], [1], [0, 0, 1, 1], [], []>} : vector<16x128xbf16>, vector<128x384xbf16>, vector<16x384xf32> -> vector<16x384xf32>
    %47 = vector.extract_strided_slice %46 {offsets = [0, 0], sizes = [16, 128], strides = [1, 1]} : vector<16x384xf32> to vector<16x128xf32>
    %48 = vector.extract_strided_slice %46 {offsets = [0, 128], sizes = [16, 128], strides = [1, 1]} : vector<16x384xf32> to vector<16x128xf32>
    %49 = vector.extract_strided_slice %46 {offsets = [0, 256], sizes = [16, 128], strides = [1, 1]} : vector<16x384xf32> to vector<16x128xf32>
    %c1_i32_20 = arith.constant 1 : i32
    %50 = tpu.dynamic_rotate %47 by %c1_i32_20 dim 0 : vector<16x128xf32>, i32 -> vector<16x128xf32>
    %cst_21 = arith.constant 0.000000e+00 : f32
    %51 = vector.broadcast %cst_21 : f32 to vector<16x128xf32>
    %52 = arith.select %20, %51, %50 : vector<16x128xi1>, vector<16x128xf32>
    %c15_i32_22 = arith.constant 15 : i32
    %53 = tpu.dynamic_rotate %49 by %c15_i32_22 dim 0 : vector<16x128xf32>, i32 -> vector<16x128xf32>
    %cst_23 = arith.constant 0.000000e+00 : f32
    %54 = vector.broadcast %cst_23 : f32 to vector<16x128xf32>
    %55 = arith.select %22, %54, %53 : vector<16x128xi1>, vector<16x128xf32>
    %56 = arith.addf %48, %52 : vector<16x128xf32>
    %57 = arith.addf %56, %55 : vector<16x128xf32>
    %c0_24 = arith.constant 0 : index
    %c0_25 = arith.constant 0 : index
    %58 = vector.load %arg6[%c0_24, %c0_25] : memref<1x128xf32, #tpu.memory_space<vmem>>, vector<1x128xf32>
    %59 = vector.broadcast %58 : vector<1x128xf32> to vector<16x128xf32>
    %60 = arith.addf %57, %59 : vector<16x128xf32>
    %61 = arith.extf %1 : vector<16x128xbf16> to vector<16x128xf32>
    %62 = arith.addf %61, %60 : vector<16x128xf32>
    %cst_26 = arith.constant 0.000000e+00 : f32
    %63 = vector.broadcast %cst_26 : f32 to vector<16x128xf32>
    %64 = arith.maximumf %62, %63 : vector<16x128xf32>
    %65 = vector.shape_cast %64 : vector<16x128xf32> to vector<1x16x128xf32>
    %66 = arith.truncf %65 : vector<1x16x128xf32> to vector<1x16x128xbf16>
    %c0_27 = arith.constant 0 : index
    %c0_28 = arith.constant 0 : index
    %c0_29 = arith.constant 0 : index
    %67 = vector.load %arg7[%c0_27, %c0_28, %c0_29] : memref<1x16x128xbf16, #tpu.memory_space<vmem>>, vector<1x16x128xbf16>
    tpu.vector_store %arg7[%c0_27, %c0_28, %c0_29], %66 {strides = array<i32>} : memref<1x16x128xbf16, #tpu.memory_space<vmem>>, vector<1x16x128xbf16>,
    return
  }
  func.func @transform_0(%arg0: i32) -> (i32, i32, i32) {
    %c0_i32 = arith.constant 0 : i32
    %c0_i32_0 = arith.constant 0 : i32
    %c0_i32_1 = arith.constant 0 : i32
    return %arg0, %c0_i32, %c0_i32_0 : i32, i32, i32
  }
  func.func @transform_1(%arg0: i32) -> (i32, i32) {
    %c0_i32 = arith.constant 0 : i32
    %c0_i32_0 = arith.constant 0 : i32
    %c0_i32_1 = arith.constant 0 : i32
    return %c0_i32, %c0_i32_0 : i32, i32
  }
  func.func @transform_2(%arg0: i32) -> (i32, i32) {
    %c0_i32 = arith.constant 0 : i32
    %c0_i32_0 = arith.constant 0 : i32
    %c0_i32_1 = arith.constant 0 : i32
    return %c0_i32, %c0_i32_0 : i32, i32
  }
  func.func @transform_3(%arg0: i32) -> (i32, i32) {
    %c0_i32 = arith.constant 0 : i32
    %c0_i32_0 = arith.constant 0 : i32
    %c0_i32_1 = arith.constant 0 : i32
    return %c0_i32, %c0_i32_0 : i32, i32
  }
  func.func @transform_4(%arg0: i32) -> (i32, i32) {
    %c0_i32 = arith.constant 0 : i32
    %c0_i32_0 = arith.constant 0 : i32
    %c0_i32_1 = arith.constant 0 : i32
    return %c0_i32, %c0_i32_0 : i32, i32
  }
  func.func @transform_5(%arg0: i32) -> (i32, i32) {
    %c0_i32 = arith.constant 0 : i32
    %c0_i32_0 = arith.constant 0 : i32
    %c0_i32_1 = arith.constant 0 : i32
    return %c0_i32, %c0_i32_0 : i32, i32
  }
  func.func @transform_6(%arg0: i32) -> (i32, i32, i32) {
    %c0_i32 = arith.constant 0 : i32
    %c0_i32_0 = arith.constant 0 : i32
    %c0_i32_1 = arith.constant 0 : i32
    return %arg0, %c0_i32, %c0_i32_0 : i32, i32, i32
  }
}

</mosaic_0001>

<llo_original>
// kernel: res_forward_nchw.1
$region0: #{res_forward_nchw.1}
  #allocation0 [shape = 'u32[]', space=smem, size = 0x4, offset = 0x4, fixed_abs, tag = 'smem constant byte address 0x4 - core index']
  #allocation1 [shape = 'u32[144,128]{1,0:T(1,128)}', space=vmem, size = 0x12000, scoped, tag = 'internal scratch']
  %s0 = inlined_call_operand.vmem [shape: bf16[2,16,128], index: 0, kind: input, shape index: {}]
  %s1 = inlined_call_operand.vmem [shape: bf16[128,384], index: 1, kind: input, shape index: {}]
  %s2 = inlined_call_operand.vmem [shape: f32[1,128], index: 2, kind: input, shape index: {}]
  %s3 = inlined_call_operand.vmem [shape: f32[1,128], index: 3, kind: input, shape index: {}]
  %s4 = inlined_call_operand.vmem [shape: bf16[128,384], index: 4, kind: input, shape index: {}]
  %s5 = inlined_call_operand.vmem [shape: f32[1,128], index: 5, kind: input, shape index: {}]
  %s6 = inlined_call_operand.vmem [shape: bf16[2,16,128], index: 6, kind: output, shape index: {}]
  %s7 = sld [smem:[#allocation0]]
  $region57: #{res_forward_nchw.1} parent=0
    _
  %s9 = ssub.s32 1, %s7
  %s10 = scalar_select 0, %s9, %s7
  loop: start=0, step=1, limit=4
  $region2: #{res_forward_nchw.1} parent=0 // loop_pre_header
    _
  $region3: #{res_forward_nchw.1} parent=0 // loop_header
    %s12 = sphi 0, %s16
    %p13 = scmp.ge.s32.totalorder %s12, 4
    %s22 = sphi 0, %s24
    %s25 = sphi 0, %s22
    %s26 = sphi 0, %s25
    %s42 = sphi 0, %s26
    %s46 = sphi 0, %s46
    %s48 = sphi 0, %s46
    %s49 = sphi 0, %s48
    %s63 = sphi 0, %s49
    %s67 = sphi 0, %s67
    %s69 = sphi 0, %s67
    %s70 = sphi 0, %s69
    %s84 = sphi 0, %s70
    %s88 = sphi 0, %s88
    %s90 = sphi 0, %s88
    %s91 = sphi 0, %s90
    %s105 = sphi 0, %s91
    %s109 = sphi 0, %s109
    %s111 = sphi 0, %s109
    %s112 = sphi 0, %s111
    %s126 = sphi 0, %s112
    %s130 = sphi 0, %s130
    %s132 = sphi 0, %s130
    %s133 = sphi 0, %s132
    %s147 = sphi 0, %s133
    %s153 = sphi 0, %s155
    %s156 = sphi 0, %s153
    %s157 = sphi 0, %s156
    %s173 = sphi 0, %s157
  $region4: #{res_forward_nchw.1} parent=0 // loop_header_branch
    %15 = sbr.rel (%p13) target = $region8
  $region5: #{res_forward_nchw.1} parent=0 // loop_body
    %s17 = ssub.s32 %s12, 1
    %s18 = ssub.s32 %s12, 2
    %s19 = sadd.s32 %s12, 1
    %s20 = ssub.s32 %s12, %s19
    %p21 = scmp.eq.s32.totalorder %s20, 0
    %s23 = sadd.s32 %s22, 1
    %s24 = scalar_select %p21, %s22, %s23
    %p27 = pneg %p21
    %p28 = scmp.eq.s32.totalorder %s12, 1
    %p29 = por %p27, %p28
    %p30 = scmp.ne.s32.totalorder %s22, %s25
    %p31 = scmp.eq.s32.totalorder %s12, 0
    %p32 = por %p30, %p31
    %p33 = scmp.ne.s32.totalorder %s22, %s25
    %p34 = scmp.eq.s32.totalorder %s17, 1
    %p35 = por %p33, %p34
    %p36 = scmp.ne.s32.totalorder %s25, %s26
    %p37 = scmp.eq.s32.totalorder %s17, 0
    %p38 = por %p36, %p37
    %p39 = scmp.ne.s32.totalorder %s25, %s26
    %p40 = scmp.eq.s32.totalorder %s18, 1
    %p41 = por %p39, %p40
    %p43 = scmp.ne.s32.totalorder %s26, %s42
    %p44 = scmp.eq.s32.totalorder %s18, 0
    %p45 = por %p43, %p44
    %s47 = sadd.s32 %s46, 1
    %p50 = scmp.eq.s32.totalorder %s12, 1
    %p51 = scmp.ne.s32.totalorder %s46, %s48
    %p52 = scmp.eq.s32.totalorder %s12, 0
    %p53 = por %p51, %p52
    %p54 = scmp.ne.s32.totalorder %s46, %s48
    %p55 = scmp.eq.s32.totalorder %s17, 1
    %p56 = por %p54, %p55
    %p57 = scmp.ne.s32.totalorder %s48, %s49
    %p58 = scmp.eq.s32.totalorder %s17, 0
    %p59 = por %p57, %p58
    %p60 = scmp.ne.s32.totalorder %s48, %s49
    %p61 = scmp.eq.s32.totalorder %s18, 1
    %p62 = por %p60, %p61
    %p64 = scmp.ne.s32.totalorder %s49, %s63
    %p65 = scmp.eq.s32.totalorder %s18, 0
    %p66 = por %p64, %p65
    %s68 = sadd.s32 %s67, 1
    %p71 = scmp.eq.s32.totalorder %s12, 1
    %p72 = scmp.ne.s32.totalorder %s67, %s69
    %p73 = scmp.eq.s32.totalorder %s12, 0
    %p74 = por %p72, %p73
    %p75 = scmp.ne.s32.totalorder %s67, %s69
    %p76 = scmp.eq.s32.totalorder %s17, 1
    %p77 = por %p75, %p76
    %p78 = scmp.ne.s32.totalorder %s69, %s70
    %p79 = scmp.eq.s32.totalorder %s17, 0
    %p80 = por %p78, %p79
    %p81 = scmp.ne.s32.totalorder %s69, %s70
    %p82 = scmp.eq.s32.totalorder %s18, 1
    %p83 = por %p81, %p82
    %p85 = scmp.ne.s32.totalorder %s70, %s84
    %p86 = scmp.eq.s32.totalorder %s18, 0
    %p87 = por %p85, %p86
    %s89 = sadd.s32 %s88, 1
    %p92 = scmp.eq.s32.totalorder %s12, 1
    %p93 = scmp.ne.s32.totalorder %s88, %s90
    %p94 = scmp.eq.s32.totalorder %s12, 0
    %p95 = por %p93, %p94
    %p96 = scmp.ne.s32.totalorder %s88, %s90
    %p97 = scmp.eq.s32.totalorder %s17, 1
    %p98 = por %p96, %p97
    %p99 = scmp.ne.s32.totalorder %s90, %s91
    %p100 = scmp.eq.s32.totalorder %s17, 0
    %p101 = por %p99, %p100
    %p102 = scmp.ne.s32.totalorder %s90, %s91
    %p103 = scmp.eq.s32.totalorder %s18, 1
    %p104 = por %p102, %p103
    %p106 = scmp.ne.s32.totalorder %s91, %s105
    %p107 = scmp.eq.s32.totalorder %s18, 0
    %p108 = por %p106, %p107
    %s110 = sadd.s32 %s109, 1
    %p113 = scmp.eq.s32.totalorder %s12, 1
    %p114 = scmp.ne.s32.totalorder %s109, %s111
    %p115 = scmp.eq.s32.totalorder %s12, 0
    %p116 = por %p114, %p115
    %p117 = scmp.ne.s32.totalorder %s109, %s111
    %p118 = scmp.eq.s32.totalorder %s17, 1
    %p119 = por %p117, %p118
    %p120 = scmp.ne.s32.totalorder %s111, %s112
    %p121 = scmp.eq.s32.totalorder %s17, 0
    %p122 = por %p120, %p121
    %p123 = scmp.ne.s32.totalorder %s111, %s112
    %p124 = scmp.eq.s32.totalorder %s18, 1
    %p125 = por %p123, %p124
    %p127 = scmp.ne.s32.totalorder %s112, %s126
    %p128 = scmp.eq.s32.totalorder %s18, 0
    %p129 = por %p127, %p128
    %s131 = sadd.s32 %s130, 1
    %p134 = scmp.eq.s32.totalorder %s12, 1
    %p135 = scmp.ne.s32.totalorder %s130, %s132
    %p136 = scmp.eq.s32.totalorder %s12, 0
    %p137 = por %p135, %p136
    %p138 = scmp.ne.s32.totalorder %s130, %s132
    %p139 = scmp.eq.s32.totalorder %s17, 1
    %p140 = por %p138, %p139
    %p141 = scmp.ne.s32.totalorder %s132, %s133
    %p142 = scmp.eq.s32.totalorder %s17, 0
    %p143 = por %p141, %p142
    %p144 = scmp.ne.s32.totalorder %s132, %s133
    %p145 = scmp.eq.s32.totalorder %s18, 1
    %p146 = por %p144, %p145
    %p148 = scmp.ne.s32.totalorder %s133, %s147
    %p149 = scmp.eq.s32.totalorder %s18, 0
    %p150 = por %p148, %p149
    %s151 = ssub.s32 %s12, %s19
    %p152 = scmp.eq.s32.totalorder %s151, 0
    %s154 = sadd.s32 %s153, 1
    %s155 = scalar_select %p152, %s153, %s154
    %p158 = pneg %p152
    %p159 = scmp.eq.s32.totalorder %s12, 1
    %p160 = por %p158, %p159
    %p161 = scmp.ne.s32.totalorder %s153, %s156
    %p162 = scmp.eq.s32.totalorder %s12, 0
    %p163 = por %p161, %p162
    %p164 = scmp.ne.s32.totalorder %s153, %s156
    %p165 = scmp.eq.s32.totalorder %s17, 1
    %p166 = por %p164, %p165
    %p167 = scmp.ne.s32.totalorder %s156, %s157
    %p168 = scmp.eq.s32.totalorder %s17, 0
    %p169 = por %p167, %p168
    %p170 = scmp.ne.s32.totalorder %s156, %s157
    %p171 = scmp.eq.s32.totalorder %s18, 1
    %p172 = por %p170, %p171
    %p174 = scmp.ne.s32.totalorder %s157, %s173
    %p175 = scmp.eq.s32.totalorder %s18, 0
    %p176 = por %p174, %p175
    %p177 = scmp.le.s32.totalorder 1, %s12
    %p178 = scmp.lt.s32.totalorder %s12, 3
    %p179 = pnand %p177, %p178
    %p180 = pneg %p179
    // Predicated region
    $region9: #{res_forward_nchw.1} parent=5 // pred_check
      _
    $region10: #{res_forward_nchw.1} parent=5 // pred_check_branch
      %182 = sbr.rel (%p179) target = $region12
    $region11: #{res_forward_nchw.1} parent=5 // pred_region
      %s183 = ssub.s32 %s12, 1
      // Predicated region
      $region13: #{res_forward_nchw.1} parent=11 // pred_check
        %p184 = pneg %p59
      $region14: #{res_forward_nchw.1} parent=11 // pred_check_branch
        %186 = sbr.rel (%p184) target = $region16
      $region15: #{res_forward_nchw.1} parent=11 // pred_region
        _
      $region16: #{res_forward_nchw.1} parent=11 // pred_fallthru
        _
      // Predicated region
      $region17: #{res_forward_nchw.1} parent=11 // pred_check
        %p187 = pneg %p80
      $region18: #{res_forward_nchw.1} parent=11 // pred_check_branch
        %189 = sbr.rel (%p187) target = $region20
      $region19: #{res_forward_nchw.1} parent=11 // pred_region
        _
      $region20: #{res_forward_nchw.1} parent=11 // pred_fallthru
        _
      // Predicated region
      $region21: #{res_forward_nchw.1} parent=11 // pred_check
        %p190 = pneg %p101
      $region22: #{res_forward_nchw.1} parent=11 // pred_check_branch
        %192 = sbr.rel (%p190) target = $region24
      $region23: #{res_forward_nchw.1} parent=11 // pred_region
        _
      $region24: #{res_forward_nchw.1} parent=11 // pred_fallthru
        _
      // Predicated region
      $region25: #{res_forward_nchw.1} parent=11 // pred_check
        %p193 = pneg %p122
      $region26: #{res_forward_nchw.1} parent=11 // pred_check_branch
        %195 = sbr.rel (%p193) target = $region28
      $region27: #{res_forward_nchw.1} parent=11 // pred_region
        _
      $region28: #{res_forward_nchw.1} parent=11 // pred_fallthru
        _
      // Predicated region
      $region29: #{res_forward_nchw.1} parent=11 // pred_check
        %p196 = pneg %p143
      $region30: #{res_forward_nchw.1} parent=11 // pred_check_branch
        %198 = sbr.rel (%p196) target = $region32
      $region31: #{res_forward_nchw.1} parent=11 // pred_region
        _
      $region32: #{res_forward_nchw.1} parent=11 // pred_fallthru
        _
    $region12: #{res_forward_nchw.1} parent=5 // pred_fallthru
      _
    %p199 = scmp.lt.s32.totalorder %s12, 2
    // Predicated region
    $region33: #{res_forward_nchw.1} parent=5 // pred_check
      %p200 = pneg %p199
    $region34: #{res_forward_nchw.1} parent=5 // pred_check_branch
      %202 = sbr.rel (%p200) target = $region36
    $region35: #{res_forward_nchw.1} parent=5 // pred_region
      // Predicated region
      $region37: #{res_forward_nchw.1} parent=35 // pred_check
        %p203 = pneg %p32
      $region38: #{res_forward_nchw.1} parent=35 // pred_check_branch
        %205 = sbr.rel (%p203) target = $region40
      $region39: #{res_forward_nchw.1} parent=35 // pred_region
        %p206 = scmp.lt.s32.totalorder %s12, 1
        %s207 = scalar_select %p206, %s12, 1
        %s208 = smul.addr %s207, 2
        %s209 = smul.addr %s208, 4
        %s210 = scalar_lea.vmem %s0, %s209
      $region40: #{res_forward_nchw.1} parent=35 // pred_fallthru
        _
    $region36: #{res_forward_nchw.1} parent=5 // pred_fallthru
      _
    %p211 = scmp.le.s32.totalorder 1, %s12
    %p212 = scmp.lt.s32.totalorder %s12, 3
    %p213 = pnand %p211, %p212
    %p214 = pneg %p213
    // Predicated region
    $region41: #{res_forward_nchw.1} parent=5 // pred_check
      _
    $region42: #{res_forward_nchw.1} parent=5 // pred_check_branch
      %216 = sbr.rel (%p213) target = $region44
    $region43: #{res_forward_nchw.1} parent=5 // pred_region
      %s217 = ssub.s32 %s12, 1
      %p218 = scmp.lt.s32.totalorder %s17, 1
      %s219 = scalar_select %p218, %s17, 1
      %s220 = smul.addr %s219, 2
      %s221 = smul.addr %s220, 4
      %s222 = scalar_lea.vmem %s0, %s221
      %p223 = pneg %p38
      %p224 = pneg %p35
      %p225 = pneg %p59
      %p226 = pneg %p56
      %p227 = pneg %p80
      %p228 = pneg %p77
      %p229 = pneg %p101
      %p230 = pneg %p98
      %p231 = pneg %p122
      %p232 = pneg %p119
      %p233 = pneg %p143
      %p234 = pneg %p140
      %p235 = pneg %p169
      %p236 = pneg %p166
      %p237 = scmp.lt.s32.totalorder %s17, 1
      %s238 = scalar_select %p237, %s17, 1
      %s239 = smul.addr %s238, 2
      %s240 = smul.addr %s239, 4
      %s241 = scalar_lea.vmem %s6, %s240
      %p242 = scmp.lt.s32.totalorder %s17, 1
      %s243 = scalar_select %p242, %s17, 1
      %s244 = smul.addr %s243, 2
      %s245 = smul.addr %s244, 4
      %s246 = scalar_lea.vmem %s0, %s245
      %p247 = scmp.lt.s32.totalorder %s17, 1
      %s248 = scalar_select %p247, %s17, 1
      %s249 = smul.addr %s248, 2
      %s250 = smul.addr %s249, 4
      %s251 = scalar_lea.vmem %s6, %s250
      %v253 = vld [vmem:[%s246] sm:$0xf]
      %v254 = vld [vmem:[%s246 + $0x4] sm:$0xf]
      %v255 = vlaneseq
      %v256 = vshrl.u32 %v255, 7
      %v257 = vadd.s32 %v256, 8
      %vm258 = vcmp.lt.s32.totalorder %v256, 0
      %v259 = vsub.s32 0, %v256
      %v260 = vsel %vm258, %v259, %v256
      %v261 = vshrl.u32 %v260, 4
      %v262 = vand.u32 %v260, 15
      %v263 = vsub.s32 0, %v262
      %v264 = vsel %vm258, %v263, %v262
      %vm265 = vcmp.lt.s32.totalorder %v257, 0
      %v266 = vsub.s32 0, %v257
      %v267 = vsel %vm265, %v266, %v257
      %v268 = vshrl.u32 %v267, 4
      %v269 = vand.u32 %v267, 15
      %v270 = vsub.s32 0, %v269
      %v271 = vsel %vm265, %v270, %v269
      %vm272 = vcmp.ne.s32.totalorder %v264, 0
      %vm273 = vcmp.ne.s32.totalorder %v271, 0
      %vm274 = vcmp.lt.s32.totalorder %v264, 0
      %vm275 = vcmp.lt.s32.totalorder %v271, 0
      %vm276 = vmand %vm274, %vm272
      %vm277 = vmand %vm275, %vm273
      %v278 = vadd.s32 %v264, 16
      %v279 = vadd.s32 %v271, 16
      %v280 = vsel %vm276, %v278, %v264
      %v281 = vsel %vm277, %v279, %v271
      %vm282 = vcmp.eq.s32.totalorder %v280, 0
      %vm283 = vcmp.eq.s32.totalorder %v281, 0
      %vm284 = vcmp.eq.s32.totalorder %v280, 15
      %vm285 = vcmp.eq.s32.totalorder %v281, 15
      %v286 = vld [vmem:[%s1] sm:$0xff]
      %v287 = vld [vmem:[%s1 + $0x8] sm:$0xf]
      %v288 = vld [vmem:[%s1 + $0xc] sm:$0xff]
      %v289 = vld [vmem:[%s1 + $0x14] sm:$0xf]
      %v290 = vld [vmem:[%s1 + $0x18] sm:$0xff]
      %v291 = vld [vmem:[%s1 + $0x20] sm:$0xf]
      %v292 = vld [vmem:[%s1 + $0x24] sm:$0xff]
      %v293 = vld [vmem:[%s1 + $0x2c] sm:$0xf]
      %v294 = vld [vmem:[%s1 + $0x30] sm:$0xff]
      %v295 = vld [vmem:[%s1 + $0x38] sm:$0xf]
      %v296 = vld [vmem:[%s1 + $0x3c] sm:$0xff]
      %v297 = vld [vmem:[%s1 + $0x44] sm:$0xf]
      %v298 = vld [vmem:[%s1 + $0x48] sm:$0xff]
      %v299 = vld [vmem:[%s1 + $0x50] sm:$0xf]
      %v300 = vld [vmem:[%s1 + $0x54] sm:$0xff]
      %v301 = vld [vmem:[%s1 + $0x5c] sm:$0xf]
      %v302 = vld [vmem:[%s1 + $0x60] sm:$0xff]
      %v303 = vld [vmem:[%s1 + $0x68] sm:$0xf]
      %v304 = vld [vmem:[%s1 + $0x6c] sm:$0xff]
      %v305 = vld [vmem:[%s1 + $0x74] sm:$0xf]
      %v306 = vld [vmem:[%s1 + $0x78] sm:$0xff]
      %v307 = vld [vmem:[%s1 + $0x80] sm:$0xf]
      %v308 = vld [vmem:[%s1 + $0x84] sm:$0xff]
      %v309 = vld [vmem:[%s1 + $0x8c] sm:$0xf]
      %v310 = vld [vmem:[%s1 + $0x90] sm:$0xff]
      %v311 = vld [vmem:[%s1 + $0x98] sm:$0xf]
      %v312 = vld [vmem:[%s1 + $0x9c] sm:$0xff]
      %v313 = vld [vmem:[%s1 + $0xa4] sm:$0xf]
      %v314 = vld [vmem:[%s1 + $0xa8] sm:$0xff]
      %v315 = vld [vmem:[%s1 + $0xb0] sm:$0xf]
      %v316 = vld [vmem:[%s1 + $0xb4] sm:$0xff]
      %v317 = vld [vmem:[%s1 + $0xbc] sm:$0xf]
      %v320 = vunpack.c.l.b16 %v253
      %v321 = vunpack.c.l.b16 %v254
      %v322 = vpack.c.b16 %v321, %v320
      %v356 = vunpack.c.l.b16 %v286
      %v357 = vunpack.c.h.b16 %v286
      %v358 = vunpack.c.l.b16 %v287
      %v359 = vunpack.c.l.b16 %v288
      %v360 = vunpack.c.h.b16 %v288
      %v361 = vunpack.c.l.b16 %v289
      %v362 = vunpack.c.l.b16 %v290
      %v363 = vunpack.c.h.b16 %v290
      %v364 = vunpack.c.l.b16 %v291
      %v365 = vunpack.c.l.b16 %v292
      %v366 = vunpack.c.h.b16 %v292
      %v367 = vunpack.c.l.b16 %v293
      %v368 = vunpack.c.l.b16 %v294
      %v369 = vunpack.c.h.b16 %v294
      %v370 = vunpack.c.l.b16 %v295
      %v371 = vunpack.c.l.b16 %v296
      %v372 = vunpack.c.h.b16 %v296
      %v373 = vunpack.c.l.b16 %v297
      %v374 = vunpack.c.l.b16 %v298
      %v375 = vunpack.c.h.b16 %v298
      %v376 = vunpack.c.l.b16 %v299
      %v377 = vunpack.c.l.b16 %v300
      %v378 = vunpack.c.h.b16 %v300
      %v379 = vunpack.c.l.b16 %v301
      %v380 = vunpack.c.l.b16 %v302
      %v381 = vunpack.c.h.b16 %v302
      %v382 = vunpack.c.l.b16 %v303
      %v383 = vunpack.c.l.b16 %v304
      %v384 = vunpack.c.h.b16 %v304
      %v385 = vunpack.c.l.b16 %v305
      %v386 = vunpack.c.l.b16 %v306
      %v387 = vunpack.c.h.b16 %v306
      %v388 = vunpack.c.l.b16 %v307
      %v389 = vunpack.c.l.b16 %v308
      %v390 = vunpack.c.h.b16 %v308
      %v391 = vunpack.c.l.b16 %v309
      %v392 = vunpack.c.l.b16 %v310
      %v393 = vunpack.c.h.b16 %v310
      %v394 = vunpack.c.l.b16 %v311
      %v395 = vunpack.c.l.b16 %v312
      %v396 = vunpack.c.h.b16 %v312
      %v397 = vunpack.c.l.b16 %v313
      %v398 = vunpack.c.l.b16 %v314
      %v399 = vunpack.c.h.b16 %v314
      %v400 = vunpack.c.l.b16 %v315
      %v401 = vunpack.c.l.b16 %v316
      %v402 = vunpack.c.h.b16 %v316
      %v403 = vunpack.c.l.b16 %v317
      %v404 = vpack.c.b16 %v359, %v356
      %v405 = vpack.c.b16 %v360, %v357
      %v406 = vpack.c.b16 %v361, %v358
      %v407 = vpack.c.b16 %v365, %v362
      %v408 = vpack.c.b16 %v366, %v363
      %v409 = vpack.c.b16 %v367, %v364
      %v410 = vpack.c.b16 %v371, %v368
      %v411 = vpack.c.b16 %v372, %v369
      %v412 = vpack.c.b16 %v373, %v370
      %v413 = vpack.c.b16 %v377, %v374
      %v414 = vpack.c.b16 %v378, %v375
      %v415 = vpack.c.b16 %v379, %v376
      %v416 = vpack.c.b16 %v383, %v380
      %v417 = vpack.c.b16 %v384, %v381
      %v418 = vpack.c.b16 %v385, %v382
      %v419 = vpack.c.b16 %v389, %v386
      %v420 = vpack.c.b16 %v390, %v387
      %v421 = vpack.c.b16 %v391, %v388
      %v422 = vpack.c.b16 %v395, %v392
      %v423 = vpack.c.b16 %v396, %v393
      %v424 = vpack.c.b16 %v397, %v394
      %v425 = vpack.c.b16 %v401, %v398
      %v426 = vpack.c.b16 %v402, %v399
      %v427 = vpack.c.b16 %v403, %v400
      %452 = vmatprep.subr.bf16.mxu0 %v405
      %453 = vmatpush1.bf16.msra.mxu0 %v404
      %454 = vmatprep.subr.bf16.mxu0 %v408
      %455 = vmatpush1.bf16.msra.mxu0 %v407
      %456 = vmatprep.subr.bf16.mxu0 %v411
      %457 = vmatpush1.bf16.msra.mxu0 %v410
      %458 = vmatprep.subr.bf16.mxu0 %v414
      %459 = vmatpush1.bf16.msra.mxu0 %v413
      %460 = vmatprep.subr.bf16.mxu0 %v417
      %461 = vmatpush1.bf16.msra.mxu0 %v416
      %462 = vmatprep.subr.bf16.mxu0 %v420
      %463 = vmatpush1.bf16.msra.mxu0 %v419
      %464 = vmatprep.subr.bf16.mxu0 %v423
      %465 = vmatpush1.bf16.msra.mxu0 %v422
      %466 = vmatprep.subr.bf16.mxu0 %v426
      %467 = vmatpush1.bf16.msra.mxu0 %v425
      %468 = vmatprep.subr.bf16.mxu0 0
      %469 = vmatpush1.bf16.msra.mxu0 0
      %470 = vmatprep.subr.bf16.mxu0 0
      %471 = vmatpush1.bf16.msra.mxu0 0
      %472 = vmatprep.subr.bf16.mxu0 0
      %473 = vmatpush1.bf16.msra.mxu0 0
      %474 = vmatprep.subr.bf16.mxu0 0
      %475 = vmatpush1.bf16.msra.mxu0 0
      %476 = vmatprep.subr.bf16.mxu0 0
      %477 = vmatpush1.bf16.msra.mxu0 0
      %478 = vmatprep.subr.bf16.mxu0 0
      %479 = vmatpush1.bf16.msra.mxu0 0
      %480 = vmatprep.subr.bf16.mxu0 0
      %481 = vmatpush1.bf16.msra.mxu0 0
      %482 = vmatprep.subr.bf16.mxu0 0
      %483 = vmatpush1.bf16.msra.mxu0 0
      %484 = vmatprep.mubr.bf16.mxu0 0
      %485 = vmatmul.mubr.bf16.gmra.mrb[0].mxu0 %v322
      %v486 = vpop.f32.mrb[0].mxu0
      %v487 = vadd.f32 0.0, %v486
      %v488 = vpop.f32.mrb[0].mxu0
      %v489 = vadd.f32 0.0, %v488
      %v490 = vpop.f32.mrb[0].mxu0
      %v491 = vadd.f32 0.0, %v490
      %v492 = vpop.f32.mrb[0].mxu0
      %v493 = vadd.f32 0.0, %v492
      %494 = vdwg.mxu0
      %495 = vmatprep.subr.bf16.mxu0 0
      %496 = vmatpush1.bf16.msra.mxu0 %v406
      %497 = vmatprep.subr.bf16.mxu0 0
      %498 = vmatpush1.bf16.msra.mxu0 %v409
      %499 = vmatprep.subr.bf16.mxu0 0
      %500 = vmatpush1.bf16.msra.mxu0 %v412
      %501 = vmatprep.subr.bf16.mxu0 0
      %502 = vmatpush1.bf16.msra.mxu0 %v415
      %503 = vmatprep.subr.bf16.mxu0 0
      %504 = vmatpush1.bf16.msra.mxu0 %v418
      %505 = vmatprep.subr.bf16.mxu0 0
      %506 = vmatpush1.bf16.msra.mxu0 %v421
      %507 = vmatprep.subr.bf16.mxu0 0
      %508 = vmatpush1.bf16.msra.mxu0 %v424
      %509 = vmatprep.subr.bf16.mxu0 0
      %510 = vmatpush1.bf16.msra.mxu0 %v427
      %511 = vmatprep.subr.bf16.mxu0 0
      %512 = vmatpush1.bf16.msra.mxu0 0
      %513 = vmatprep.subr.bf16.mxu0 0
      %514 = vmatpush1.bf16.msra.mxu0 0
      %515 = vmatprep.subr.bf16.mxu0 0
      %516 = vmatpush1.bf16.msra.mxu0 0
      %517 = vmatprep.subr.bf16.mxu0 0
      %518 = vmatpush1.bf16.msra.mxu0 0
      %519 = vmatprep.subr.bf16.mxu0 0
      %520 = vmatpush1.bf16.msra.mxu0 0
      %521 = vmatprep.subr.bf16.mxu0 0
      %522 = vmatpush1.bf16.msra.mxu0 0
      %523 = vmatprep.subr.bf16.mxu0 0
      %524 = vmatpush1.bf16.msra.mxu0 0
      %525 = vmatprep.subr.bf16.mxu0 0
      %526 = vmatpush1.bf16.msra.mxu0 0
      %527 = vmatprep.mubr.bf16.mxu0 0
      %528 = vmatmul.mubr.bf16.gmra.mrb[0].mxu0 %v322
      %v529 = vpop.f32.mrb[0].mxu0
      %v530 = vadd.f32 0.0, %v529
      %v531 = vpop.f32.mrb[0].mxu0
      %v532 = vpop.f32.mrb[0].mxu0
      %v533 = vadd.f32 0.0, %v532
      %v534 = vpop.f32.mrb[0].mxu0
      %535 = vdwg.mxu0
      %v536 = vrot.slane %v487, 7
      %v537 = vrot.slane %v491, 7
      %vm538 = vcmp.lt.s32.totalorder %v256, 1
      %v539 = vsel %vm538, %v536, %v537
      %v540 = vsel %vm538, %v537, %v536
      %v541 = vsel %vm282, 0.0, %v540
      %v542 = vsel %vm283, 0.0, %v539
      %v543 = vrot.slane %v530, 1
      %v544 = vrot.slane %v533, 1
      %vm545 = vcmp.lt.s32.totalorder %v256, 7
      %v546 = vsel %vm545, %v543, %v544
      %v547 = vsel %vm545, %v544, %v543
      %v548 = vsel %vm284, 0.0, %v546
      %v549 = vsel %vm285, 0.0, %v547
      %v550 = vadd.f32 %v489, %v541
      %v551 = vadd.f32 %v493, %v542
      %v552 = vadd.f32 %v550, %v548
      %v553 = vadd.f32 %v551, %v549
      %v554 = vld [vmem:[%s2] sm:$0x1]
      %v556 = vlaneseq
      %v557 = vshrl.u32 %v556, 7
      %v558 = vsub.s32 0, %v557
      %v559 = vrot.slane %v554, %v558
      %v561 = vmul.f32 %v552, %v559
      %v562 = vmul.f32 %v553, %v559
      %v563 = vld [vmem:[%s3] sm:$0x1]
      %v565 = vlaneseq
      %v566 = vshrl.u32 %v565, 7
      %v567 = vsub.s32 0, %v566
      %v568 = vrot.slane %v563, %v567
      %v570 = vadd.f32 %v561, %v568
      %v571 = vadd.f32 %v562, %v568
      %v572 = vmax.f32 %v570, 0.0
      %v573 = vmax.f32 %v571, 0.0
      %v574 = vpack.c.bf16 %v573, %v572
      %v575 = vld [vmem:[%s4] sm:$0xff]
      %v576 = vld [vmem:[%s4 + $0x8] sm:$0xf]
      %v577 = vld [vmem:[%s4 + $0xc] sm:$0xff]
      %v578 = vld [vmem:[%s4 + $0x14] sm:$0xf]
      %v579 = vld [vmem:[%s4 + $0x18] sm:$0xff]
      %v580 = vld [vmem:[%s4 + $0x20] sm:$0xf]
      %v581 = vld [vmem:[%s4 + $0x24] sm:$0xff]
      %v582 = vld [vmem:[%s4 + $0x2c] sm:$0xf]
      %v583 = vld [vmem:[%s4 + $0x30] sm:$0xff]
      %v584 = vld [vmem:[%s4 + $0x38] sm:$0xf]
      %v585 = vld [vmem:[%s4 + $0x3c] sm:$0xff]
      %v586 = vld [vmem:[%s4 + $0x44] sm:$0xf]
      %v587 = vld [vmem:[%s4 + $0x48] sm:$0xff]
      %v588 = vld [vmem:[%s4 + $0x50] sm:$0xf]
      %v589 = vld [vmem:[%s4 + $0x54] sm:$0xff]
      %v590 = vld [vmem:[%s4 + $0x5c] sm:$0xf]
      %v591 = vld [vmem:[%s4 + $0x60] sm:$0xff]
      %v592 = vld [vmem:[%s4 + $0x68] sm:$0xf]
      %v593 = vld [vmem:[%s4 + $0x6c] sm:$0xff]
      %v594 = vld [vmem:[%s4 + $0x74] sm:$0xf]
      %v595 = vld [vmem:[%s4 + $0x78] sm:$0xff]
      %v596 = vld [vmem:[%s4 + $0x80] sm:$0xf]
      %v597 = vld [vmem:[%s4 + $0x84] sm:$0xff]
      %v598 = vld [vmem:[%s4 + $0x8c] sm:$0xf]
      %v599 = vld [vmem:[%s4 + $0x90] sm:$0xff]
      %v600 = vld [vmem:[%s4 + $0x98] sm:$0xf]
      %v601 = vld [vmem:[%s4 + $0x9c] sm:$0xff]
      %v602 = vld [vmem:[%s4 + $0xa4] sm:$0xf]
      %v603 = vld [vmem:[%s4 + $0xa8] sm:$0xff]
      %v604 = vld [vmem:[%s4 + $0xb0] sm:$0xf]
      %v605 = vld [vmem:[%s4 + $0xb4] sm:$0xff]
      %v606 = vld [vmem:[%s4 + $0xbc] sm:$0xf]
      %v639 = vunpack.c.l.b16 %v575
      %v640 = vunpack.c.h.b16 %v575
      %v641 = vunpack.c.l.b16 %v576
      %v642 = vunpack.c.l.b16 %v577
      %v643 = vunpack.c.h.b16 %v577
      %v644 = vunpack.c.l.b16 %v578
      %v645 = vunpack.c.l.b16 %v579
      %v646 = vunpack.c.h.b16 %v579
      %v647 = vunpack.c.l.b16 %v580
      %v648 = vunpack.c.l.b16 %v581
      %v649 = vunpack.c.h.b16 %v581
      %v650 = vunpack.c.l.b16 %v582
      %v651 = vunpack.c.l.b16 %v583
      %v652 = vunpack.c.h.b16 %v583
      %v653 = vunpack.c.l.b16 %v584
      %v654 = vunpack.c.l.b16 %v585
      %v655 = vunpack.c.h.b16 %v585
      %v656 = vunpack.c.l.b16 %v586
      %v657 = vunpack.c.l.b16 %v587
      %v658 = vunpack.c.h.b16 %v587
      %v659 = vunpack.c.l.b16 %v588
      %v660 = vunpack.c.l.b16 %v589
      %v661 = vunpack.c.h.b16 %v589
      %v662 = vunpack.c.l.b16 %v590
      %v663 = vunpack.c.l.b16 %v591
      %v664 = vunpack.c.h.b16 %v591
      %v665 = vunpack.c.l.b16 %v592
      %v666 = vunpack.c.l.b16 %v593
      %v667 = vunpack.c.h.b16 %v593
      %v668 = vunpack.c.l.b16 %v594
      %v669 = vunpack.c.l.b16 %v595
      %v670 = vunpack.c.h.b16 %v595
      %v671 = vunpack.c.l.b16 %v596
      %v672 = vunpack.c.l.b16 %v597
      %v673 = vunpack.c.h.b16 %v597
      %v674 = vunpack.c.l.b16 %v598
      %v675 = vunpack.c.l.b16 %v599
      %v676 = vunpack.c.h.b16 %v599
      %v677 = vunpack.c.l.b16 %v600
      %v678 = vunpack.c.l.b16 %v601
      %v679 = vunpack.c.h.b16 %v601
      %v680 = vunpack.c.l.b16 %v602
      %v681 = vunpack.c.l.b16 %v603
      %v682 = vunpack.c.h.b16 %v603
      %v683 = vunpack.c.l.b16 %v604
      %v684 = vunpack.c.l.b16 %v605
      %v685 = vunpack.c.h.b16 %v605
      %v686 = vunpack.c.l.b16 %v606
      %v687 = vpack.c.b16 %v642, %v639
      %v688 = vpack.c.b16 %v643, %v640
      %v689 = vpack.c.b16 %v644, %v641
      %v690 = vpack.c.b16 %v648, %v645
      %v691 = vpack.c.b16 %v649, %v646
      %v692 = vpack.c.b16 %v650, %v647
      %v693 = vpack.c.b16 %v654, %v651
      %v694 = vpack.c.b16 %v655, %v652
      %v695 = vpack.c.b16 %v656, %v653
      %v696 = vpack.c.b16 %v660, %v657
      %v697 = vpack.c.b16 %v661, %v658
      %v698 = vpack.c.b16 %v662, %v659
      %v699 = vpack.c.b16 %v666, %v663
      %v700 = vpack.c.b16 %v667, %v664
      %v701 = vpack.c.b16 %v668, %v665
      %v702 = vpack.c.b16 %v672, %v669
      %v703 = vpack.c.b16 %v673, %v670
      %v704 = vpack.c.b16 %v674, %v671
      %v705 = vpack.c.b16 %v678, %v675
      %v706 = vpack.c.b16 %v679, %v676
      %v707 = vpack.c.b16 %v680, %v677
      %v708 = vpack.c.b16 %v684, %v681
      %v709 = vpack.c.b16 %v685, %v682
      %v710 = vpack.c.b16 %v686, %v683
      %735 = vmatprep.subr.bf16.mxu0 %v688
      %736 = vmatpush1.bf16.msra.mxu0 %v687
      %737 = vmatprep.subr.bf16.mxu0 %v691
      %738 = vmatpush1.bf16.msra.mxu0 %v690
      %739 = vmatprep.subr.bf16.mxu0 %v694
      %740 = vmatpush1.bf16.msra.mxu0 %v693
      %741 = vmatprep.subr.bf16.mxu0 %v697
      %742 = vmatpush1.bf16.msra.mxu0 %v696
      %743 = vmatprep.subr.bf16.mxu0 %v700
      %744 = vmatpush1.bf16.msra.mxu0 %v699
      %745 = vmatprep.subr.bf16.mxu0 %v703
      %746 = vmatpush1.bf16.msra.mxu0 %v702
      %747 = vmatprep.subr.bf16.mxu0 %v706
      %748 = vmatpush1.bf16.msra.mxu0 %v705
      %749 = vmatprep.subr.bf16.mxu0 %v709
      %750 = vmatpush1.bf16.msra.mxu0 %v708
      %751 = vmatprep.subr.bf16.mxu0 0
      %752 = vmatpush1.bf16.msra.mxu0 0
      %753 = vmatprep.subr.bf16.mxu0 0
      %754 = vmatpush1.bf16.msra.mxu0 0
      %755 = vmatprep.subr.bf16.mxu0 0
      %756 = vmatpush1.bf16.msra.mxu0 0
      %757 = vmatprep.subr.bf16.mxu0 0
      %758 = vmatpush1.bf16.msra.mxu0 0
      %759 = vmatprep.subr.bf16.mxu0 0
      %760 = vmatpush1.bf16.msra.mxu0 0
      %761 = vmatprep.subr.bf16.mxu0 0
      %762 = vmatpush1.bf16.msra.mxu0 0
      %763 = vmatprep.subr.bf16.mxu0 0
      %764 = vmatpush1.bf16.msra.mxu0 0
      %765 = vmatprep.subr.bf16.mxu0 0
      %766 = vmatpush1.bf16.msra.mxu0 0
      %767 = vmatprep.mubr.bf16.mxu0 0
      %768 = vmatmul.mubr.bf16.gmra.mrb[0].mxu0 %v574
      %v769 = vpop.f32.mrb[0].mxu0
      %v770 = vadd.f32 0.0, %v769
      %v771 = vpop.f32.mrb[0].mxu0
      %v772 = vadd.f32 0.0, %v771
      %v773 = vpop.f32.mrb[0].mxu0
      %v774 = vadd.f32 0.0, %v773
      %v775 = vpop.f32.mrb[0].mxu0
      %v776 = vadd.f32 0.0, %v775
      %777 = vdwg.mxu0
      %778 = vmatprep.subr.bf16.mxu0 0
      %779 = vmatpush1.bf16.msra.mxu0 %v689
      %780 = vmatprep.subr.bf16.mxu0 0
      %781 = vmatpush1.bf16.msra.mxu0 %v692
      %782 = vmatprep.subr.bf16.mxu0 0
      %783 = vmatpush1.bf16.msra.mxu0 %v695
      %784 = vmatprep.subr.bf16.mxu0 0
      %785 = vmatpush1.bf16.msra.mxu0 %v698
      %786 = vmatprep.subr.bf16.mxu0 0
      %787 = vmatpush1.bf16.msra.mxu0 %v701
      %788 = vmatprep.subr.bf16.mxu0 0
      %789 = vmatpush1.bf16.msra.mxu0 %v704
      %790 = vmatprep.subr.bf16.mxu0 0
      %791 = vmatpush1.bf16.msra.mxu0 %v707
      %792 = vmatprep.subr.bf16.mxu0 0
      %793 = vmatpush1.bf16.msra.mxu0 %v710
      %794 = vmatprep.subr.bf16.mxu0 0
      %795 = vmatpush1.bf16.msra.mxu0 0
      %796 = vmatprep.subr.bf16.mxu0 0
      %797 = vmatpush1.bf16.msra.mxu0 0
      %798 = vmatprep.subr.bf16.mxu0 0
      %799 = vmatpush1.bf16.msra.mxu0 0
      %800 = vmatprep.subr.bf16.mxu0 0
      %801 = vmatpush1.bf16.msra.mxu0 0
      %802 = vmatprep.subr.bf16.mxu0 0
      %803 = vmatpush1.bf16.msra.mxu0 0
      %804 = vmatprep.subr.bf16.mxu0 0
      %805 = vmatpush1.bf16.msra.mxu0 0
      %806 = vmatprep.subr.bf16.mxu0 0
      %807 = vmatpush1.bf16.msra.mxu0 0
      %808 = vmatprep.subr.bf16.mxu0 0
      %809 = vmatpush1.bf16.msra.mxu0 0
      %810 = vmatprep.mubr.bf16.mxu0 0
      %811 = vmatmul.mubr.bf16.gmra.mrb[0].mxu0 %v574
      %v812 = vpop.f32.mrb[0].mxu0
      %v813 = vadd.f32 0.0, %v812
      %v814 = vpop.f32.mrb[0].mxu0
      %v815 = vpop.f32.mrb[0].mxu0
      %v816 = vadd.f32 0.0, %v815
      %v817 = vpop.f32.mrb[0].mxu0
      %818 = vdwg.mxu0
      %v819 = vrot.slane %v770, 7
      %v820 = vrot.slane %v774, 7
      %v821 = vsel %vm538, %v819, %v820
      %v822 = vsel %vm538, %v820, %v819
      %v823 = vsel %vm282, 0.0, %v822
      %v824 = vsel %vm283, 0.0, %v821
      %v825 = vrot.slane %v813, 1
      %v826 = vrot.slane %v816, 1
      %v827 = vsel %vm545, %v825, %v826
      %v828 = vsel %vm545, %v826, %v825
      %v829 = vsel %vm284, 0.0, %v827
      %v830 = vsel %vm285, 0.0, %v828
      %v831 = vadd.f32 %v772, %v823
      %v832 = vadd.f32 %v776, %v824
      %v833 = vadd.f32 %v831, %v829
      %v834 = vadd.f32 %v832, %v830
      %v835 = vld [vmem:[%s5] sm:$0x1]
      %v837 = vlaneseq
      %v838 = vshrl.u32 %v837, 7
      %v839 = vsub.s32 0, %v838
      %v840 = vrot.slane %v835, %v839
      %v842 = vadd.f32 %v833, %v840
      %v843 = vadd.f32 %v834, %v840
      %v844 = vunpack.c.l.bf16 %v253
      %v845 = vunpack.c.l.bf16 %v254
      %v846 = vadd.f32 %v844, %v842
      %v847 = vadd.f32 %v845, %v843
      %v848 = vmax.f32 %v846, 0.0
      %v849 = vmax.f32 %v847, 0.0
      %v850 = vpack.c.bf16 %v849, %v848
      %v852 = vunpack.c.l.b16 %v850
      %v853 = vunpack.c.h.b16 %v850
      %v854 = vpack.c.b16 %v852, %v852
      %v855 = vpack.c.b16 %v853, %v853
      %858 = vst [vmem:[%s251] sm:$0xf] %v854
      %859 = vst [vmem:[%s251 + $0x4] sm:$0xf] %v855
      %p860 = scmp.lt.s32.totalorder %s17, 1
      %s861 = scalar_select %p860, %s17, 1
      %s862 = smul.addr %s861, 2
      %s863 = smul.addr %s862, 4
      %s864 = scalar_lea.vmem %s6, %s863
      // Predicated region
      $region45: #{res_forward_nchw.1} parent=43 // pred_check
        %p865 = pneg %p166
      $region46: #{res_forward_nchw.1} parent=43 // pred_check_branch
        %867 = sbr.rel (%p865) target = $region48
      $region47: #{res_forward_nchw.1} parent=43 // pred_region
        _
      $region48: #{res_forward_nchw.1} parent=43 // pred_fallthru
        _
    $region44: #{res_forward_nchw.1} parent=5 // pred_fallthru
      _
    %p868 = scmp.le.s32.totalorder 2, %s12
    // Predicated region
    $region49: #{res_forward_nchw.1} parent=5 // pred_check
      %p869 = pneg %p868
    $region50: #{res_forward_nchw.1} parent=5 // pred_check_branch
      %871 = sbr.rel (%p869) target = $region52
    $region51: #{res_forward_nchw.1} parent=5 // pred_region
      %s872 = ssub.s32 %s12, 2
      // Predicated region
      $region53: #{res_forward_nchw.1} parent=51 // pred_check
        %p873 = pneg %p172
      $region54: #{res_forward_nchw.1} parent=51 // pred_check_branch
        %875 = sbr.rel (%p873) target = $region56
      $region55: #{res_forward_nchw.1} parent=51 // pred_region
        %p876 = scmp.lt.s32.totalorder %s18, 1
        %s877 = scalar_select %p876, %s18, 1
        %s878 = smul.addr %s877, 2
        %s879 = smul.addr %s878, 4
        %s880 = scalar_lea.vmem %s6, %s879
      $region56: #{res_forward_nchw.1} parent=51 // pred_fallthru
        _
    $region52: #{res_forward_nchw.1} parent=5 // pred_fallthru
      _
  $region6: #{res_forward_nchw.1} parent=0 // loop_footer
    %s16 = sadd.s32 1, %s12
  $region7: #{res_forward_nchw.1} parent=0 // loop_footer_branch
    %11 = sbr.rel target = $region3
  $region8: #{res_forward_nchw.1} parent=0 // loop_exit
    _

</llo_original>
